<compile_context>
chip_gen: v7x
topology: tpu7x:2x2x1
jax: 0.10.0
libtpu: 0.0.40
codegen_flags: <defaults>
</compile_context>

<pallas_src>
import jax
import jax.numpy as jnp
from jax.experimental import pallas as pl
from jax.experimental.pallas import tpu as pltpu

LANES = 128                    # vreg lane width
TARGET_BLOCK_ROWS = 2048       # 2048 * 128 * 4B = 1 MiB per f32 tile
SMALL_N_THRESHOLD = 64 * 1024  # below this, plain XLA fusion beats a pallas_call


def _schedule_kernel(bw_ref, t_ref, out_ref):
    # bw_ref: (2,) f32 in SMEM -> [b, w];  out = b + |w| * t  (compute in f32)
    b = bw_ref[0]
    w_abs = jnp.abs(bw_ref[1])
    t = t_ref[...].astype(jnp.float32)
    out_ref[...] = (b + w_abs * t).astype(out_ref.dtype)


def learned_linear_schedule(t, b, w, *, force_pallas=False):
    """Pallas forward of LearnedLinearSchedule: b + |w| * t, any t shape."""
    t = jnp.asarray(t)
    orig_shape = t.shape

    # Keep native floating dtype end-to-end (halves bytes moved for bf16/f16);
    # non-float t is promoted to f32 (matches torch promotion with f32 params).
    if jnp.issubdtype(t.dtype, jnp.floating):
        slab_dtype = t.dtype
    else:
        slab_dtype = jnp.float32

    b32 = jnp.asarray(b, jnp.float32).reshape(())
    w32 = jnp.asarray(w, jnp.float32).reshape(())

    flat = t.reshape(-1).astype(slab_dtype)
    n = flat.shape[0]

    # Tiny inputs: the pallas_call launch + packing HLOs dwarf the work.
    if n < SMALL_N_THRESHOLD and not force_pallas:
        out = (b32 + jnp.abs(w32) * flat.astype(jnp.float32)).astype(slab_dtype)
        return out.reshape(orig_shape)

    itemsize = jnp.dtype(slab_dtype).itemsize
    sublanes = 8 * (4 // itemsize)        # 8 (f32) / 16 (bf16, f16)

    # Lane-dense 2-D packing: (rows, 128) with rows a multiple of the sublane
    # count and of block_rows, so every vld/vst is full-width and unmasked.
    rows = pl.cdiv(max(n, 1), LANES)
    rows = ((rows + sublanes - 1) // sublanes) * sublanes

    # Block sizing: ~1 MiB tiles amortize the ~0.35us per-grid-step overhead,
    # but keep >= 2 grid steps when there's enough work so both v7x TCs are
    # fed under dimension_semantics=("parallel",).
    n_blocks = pl.cdiv(rows, TARGET_BLOCK_ROWS)
    if n_blocks < 2 and rows >= 2 * sublanes:
        n_blocks = 2
    block_rows = ((pl.cdiv(rows, n_blocks) + sublanes - 1) // sublanes) * sublanes
    rows = n_blocks * block_rows
    padded = rows * LANES

    # Pad / slice only when actually required (each is a full extra HBM pass).
    if padded != n:
        flat = jnp.pad(flat, (0, padded - n))
    t2d = flat.reshape(rows, LANES)

    bw = jnp.stack([b32, w32])            # (2,) f32 scalars -> SMEM

    block_bytes = block_rows * LANES * itemsize
    out2d = pl.pallas_call(
        _schedule_kernel,
        out_shape=jax.ShapeDtypeStruct((rows, LANES), slab_dtype),
        grid=(n_blocks,),
        in_specs=[
            pl.BlockSpec(memory_space=pltpu.MemorySpace.SMEM),      # (b, w)
            pl.BlockSpec((block_rows, LANES), lambda i: (i, 0)),    # t tile
        ],
        out_specs=pl.BlockSpec((block_rows, LANES), lambda i: (i, 0)),
        compiler_params=pltpu.CompilerParams(
            dimension_semantics=("parallel",),
            # 2 arrays x 2 buffers x block, with headroom; keeps v5e's 16 MiB
            # scoped-VMEM default from ever being an issue.
            vmem_limit_bytes=max(8 << 20, 8 * block_bytes),
        ),
        cost_estimate=pl.CostEstimate(
            flops=2 * padded,
            transcendentals=0,
            bytes_accessed=2 * padded * itemsize + 8),
    )(bw, t2d)

    out = out2d.reshape(-1)
    if padded != n:
        out = out[:n]
    return out.reshape(orig_shape)


def _reference(t, b, w):
    return (jnp.asarray(b, jnp.float32)
            + jnp.abs(jnp.asarray(w, jnp.float32)) * t.astype(jnp.float32))


if __name__ == "__main__":
    key = jax.random.PRNGKey(0)
    k1, k2, k3 = jax.random.split(key, 3)

    # Module __init__: b = gamma_min, w = gamma_max - gamma_min.
    gamma_min, gamma_max = -13.3, 5.0
    b = jnp.float32(gamma_min)
    # Negative w (as a trained parameter could be) so the |w| path is exercised.
    w = jnp.float32(-(gamma_max - gamma_min))

    ok = True

    # 1) Module-style tiny timestep vector, forced through the Pallas path.
    t_small = jax.random.uniform(k1, (2,), dtype=jnp.float32)
    out_small = jax.block_until_ready(
        learned_linear_schedule(t_small, b, w, force_pallas=True))
    ref_small = _reference(t_small, b, w)
    ok &= out_small.shape == t_small.shape
    ok &= bool(jnp.allclose(out_small, ref_small, atol=1e-5, rtol=1e-5))

    # 2) Aligned input: no pad, no tail slice, 2-step grid.
    t_med = jax.random.uniform(k2, (4, 1024), dtype=jnp.float32)
    out_med = jax.block_until_ready(
        learned_linear_schedule(t_med, b, w, force_pallas=True))
    ok &= bool(jnp.allclose(out_med, _reference(t_med, b, w),
                            atol=1e-5, rtol=1e-5))

    # 3) bf16 stays bf16 end-to-end; cast folded into the kernel, compute f32.
    t_bf16 = jax.random.uniform(k3, (2, 64), dtype=jnp.float32).astype(jnp.bfloat16)
    out_bf16 = jax.block_until_ready(
        learned_linear_schedule(t_bf16, b, w, force_pallas=True))
    ref_bf16 = _reference(t_bf16.astype(jnp.float32), b, w).astype(jnp.bfloat16)
    ok &= out_bf16.dtype == jnp.bfloat16
    ok &= bool(jnp.allclose(out_bf16.astype(jnp.float32),
                            ref_bf16.astype(jnp.float32),
                            atol=5e-2, rtol=5e-2))

    # 4) Small-input fast path (bypasses pallas_call entirely).
    out_fast = jax.block_until_ready(learned_linear_schedule(t_small, b, w))
    ok &= bool(jnp.allclose(out_fast, ref_small, atol=1e-5, rtol=1e-5))

    assert ok, "kernel mismatch vs reference"
    print("KERNEL_OK")
</pallas_src>

<mosaic_0001>
module attributes {stable_mosaic.version = 11 : i64} {
  func.func @_schedule_kernel(%arg0: i32, %arg1: memref<2xf32, #tpu.memory_space<smem>>, %arg2: memref<8x128xf32, #tpu.memory_space<vmem>>, %arg3: memref<8x128xf32, #tpu.memory_space<vmem>>) attributes {dimension_semantics = [#tpu.dimension_semantics<parallel>], iteration_bounds = array<i64: 1>, scalar_prefetch = 0 : i64, scratch_operands = 0 : i64, tpu.core_type = #tpu.core_type<tc>, window_params = [{transform_indices = @transform_0, window_bounds = array<i64: 2>}, {transform_indices = @transform_1, window_bounds = array<i64: 8, 128>}, {transform_indices = @transform_2, window_bounds = array<i64: 8, 128>}]} {
    %c0 = arith.constant 0 : index
    %0 = memref.load %arg1[%c0] : memref<2xf32, #tpu.memory_space<smem>>
    %c1 = arith.constant 1 : index
    %1 = memref.load %arg1[%c1] : memref<2xf32, #tpu.memory_space<smem>>
    %2 = math.absf %1 : f32
    %c0_0 = arith.constant 0 : index
    %c0_1 = arith.constant 0 : index
    %3 = vector.load %arg2[%c0_0, %c0_1] : memref<8x128xf32, #tpu.memory_space<vmem>>, vector<8x128xf32>
    %4 = vector.broadcast %2 : f32 to vector<8x128xf32>
    %5 = arith.mulf %4, %3 : vector<8x128xf32>
    %6 = vector.broadcast %0 : f32 to vector<8x128xf32>
    %7 = arith.addf %6, %5 : vector<8x128xf32>
    %c0_2 = arith.constant 0 : index
    %c0_3 = arith.constant 0 : index
    %8 = vector.load %arg3[%c0_2, %c0_3] : memref<8x128xf32, #tpu.memory_space<vmem>>, vector<8x128xf32>
    tpu.vector_store %arg3[%c0_2, %c0_3], %7 {strides = array<i32>} : memref<8x128xf32, #tpu.memory_space<vmem>>, vector<8x128xf32>,
    return
  }
  func.func @transform_0(%arg0: i32) -> i32 {
    %c0_i32 = arith.constant 0 : i32
    %c0_i32_0 = arith.constant 0 : i32
    return %c0_i32 : i32
  }
  func.func @transform_1(%arg0: i32) -> (i32, i32) {
    %c0_i32 = arith.constant 0 : i32
    %c0_i32_0 = arith.constant 0 : i32
    return %arg0, %c0_i32 : i32, i32
  }
  func.func @transform_2(%arg0: i32) -> (i32, i32) {
    %c0_i32 = arith.constant 0 : i32
    %c0_i32_0 = arith.constant 0 : i32
    return %arg0, %c0_i32 : i32, i32
  }
}

</mosaic_0001>

<llo_original>
// kernel: tpu_custom_call.1
$region0: #{tpu_custom_call.1}
  #allocation0 [shape = 'u32[]', space=smem, size = 0x4, offset = 0x4, fixed_abs, tag = 'smem constant byte address 0x4 - core index']
  #allocation1 [shape = 'u32[144,128]{1,0:T(1,128)}', space=vmem, size = 0x12000, scoped, tag = 'internal scratch']
  %s0 = inlined_call_operand.hbm [shape: f32[2], index: 0, kind: input, shape index: {}]
  %s1 = inlined_call_operand.hbm [shape: f32[8,128], index: 1, kind: input, shape index: {}]
  %s2 = inlined_call_operand.hbm [shape: f32[8,128], index: 2, kind: output, shape index: {}]
  %s3 = sld [smem:[#allocation0]]
  $region26: #{tpu_custom_call.1} parent=0
    _
  %s5 = ssub.s32 1, %s3
  %s6 = scalar_select 0, %s5, %s3
  $region1: #{tpu_custom_call.1} parent=0
    #allocation2 [shape = 'u8[512]{0}', space=smem, size = 0x200, scoped, tag = 'input window, operand 0, single buffered']
    #allocation3 [shape = 's32[1]{0}', space=sflag, size = 0x4, scoped, tag = 'scoped memory for tpu_custom_call.1']
    #allocation4 [shape = 's32[1]{0}', space=sflag, size = 0x4, scoped, tag = 'scoped memory for tpu_custom_call.1']
    #allocation5 [shape = 's32[1]{0}', space=sflag, size = 0x4, scoped, tag = 'scoped memory for tpu_custom_call.1']
    #allocation6 [shape = 'u8[4096]{0}', space=vmem, size = 0x1000, scoped, tag = 'input window, operand 1, single buffered']
    #allocation7 [shape = 'u8[4096]{0}', space=vmem, size = 0x1000, scoped, tag = 'output window, operand 0, single buffered']
    %7 = vsyncpa [#allocation5], 0
    %8 = vsyncpa [#allocation3], 0
    %9 = vsyncpa [#allocation4], 0
    // Predicated region
    $region2: #{tpu_custom_call.1} parent=1 // pred_check
      _
    $region3: #{tpu_custom_call.1} parent=1 // pred_check_branch
      %11 = sbr.rel (0) target = $region5
    $region4: #{tpu_custom_call.1} parent=1 // pred_region
      %s13 = ssub.s32 16, 16
      %14 = vsyncadd [#allocation5], %s13
      %17 = dma.hbm_to_smem %s0, 16, [#allocation2], [#allocation5]
    $region5: #{tpu_custom_call.1} parent=1 // pred_fallthru
      _
    // Predicated region
    $region6: #{tpu_custom_call.1} parent=1 // pred_check
      _
    $region7: #{tpu_custom_call.1} parent=1 // pred_check_branch
      %19 = sbr.rel (0) target = $region9
    $region8: #{tpu_custom_call.1} parent=1 // pred_region
      %s21 = ssub.s32 128, 128
      %22 = vsyncadd [#allocation3], %s21
      %s24 = sshll.u32 [#allocation6], 4
      %s25 = int_to_ptr.vmem [resolvable:$true] %s24
      %27 = dma.hbm_to_vmem [thread:$0]  %s1, 128, %s25, [#allocation3]
    $region9: #{tpu_custom_call.1} parent=1 // pred_fallthru
      _
    // Predicated region
    $region10: #{tpu_custom_call.1} parent=1 // pred_check
      _
    $region11: #{tpu_custom_call.1} parent=1 // pred_check_branch
      %29 = sbr.rel (0) target = $region13
    $region12: #{tpu_custom_call.1} parent=1 // pred_region
      %30 = dma.done [#allocation5], 16
    $region13: #{tpu_custom_call.1} parent=1 // pred_fallthru
      _
    // Predicated region
    $region14: #{tpu_custom_call.1} parent=1 // pred_check
      _
    $region15: #{tpu_custom_call.1} parent=1 // pred_check_branch
      %32 = sbr.rel (0) target = $region17
    $region16: #{tpu_custom_call.1} parent=1 // pred_region
      %33 = dma.done [#allocation3], 128
    $region17: #{tpu_custom_call.1} parent=1 // pred_fallthru
      _
    %34 = sfence
    %s35 = sld [smem:[#allocation2]]
    %s36 = sld [smem:[#allocation2 + $0x1]]
    %s37 = sand.u32 2147483647, %s36
    %v38 = vld [vmem:[#allocation6] sm:$0xff]
    %v39 = vstv %s37
    %v40 = vmul.f32 %v39, %v38
    %v41 = vstv %s35
    %v42 = vadd.f32 %v41, %v40
    %43 = vst [vmem:[#allocation7] sm:$0xff] %v42
    // Predicated region
    $region18: #{tpu_custom_call.1} parent=1 // pred_check
      _
    $region19: #{tpu_custom_call.1} parent=1 // pred_check_branch
      %45 = sbr.rel (0) target = $region21
    $region20: #{tpu_custom_call.1} parent=1 // pred_region
      %s47 = ssub.s32 128, 128
      %48 = vsyncadd [#allocation4], %s47
      %s50 = sshll.u32 [#allocation7], 4
      %s51 = int_to_ptr.vmem [resolvable:$true] %s50
      %53 = dma.vmem_to_hbm [thread:$0]  %s51, 128, %s2, [#allocation4]
    $region21: #{tpu_custom_call.1} parent=1 // pred_fallthru
      _
    // Predicated region
    $region22: #{tpu_custom_call.1} parent=1 // pred_check
      _
    $region23: #{tpu_custom_call.1} parent=1 // pred_check_branch
      %55 = sbr.rel (0) target = $region25
    $region24: #{tpu_custom_call.1} parent=1 // pred_region
      %56 = dma.done [#allocation4], 128
    $region25: #{tpu_custom_call.1} parent=1 // pred_fallthru
      _
    %57 = vsyncpa [#allocation3], 1
    %58 = vsyncpa [#allocation4], 1
    %59 = vsyncpa [#allocation5], 1

</llo_original>
